<compile_context>
chip_gen: v7x
topology: tpu7x:2x2x1
jax: 0.10.0
libtpu: 0.0.40
codegen_flags: <defaults>
</compile_context>

<pallas_src>
import jax
import jax.numpy as jnp
import numpy as np
from jax import lax
from jax.experimental import pallas as pl
from jax.experimental.pallas import tpu as pltpu

EPS = 1e-5  # PyTorch InstanceNorm2d default


def _round_up(x, m):
    return ((x + m - 1) // m) * m


def _make_convblock_kernel(k, stride, wg, cin_pad, lgrid_pad, n_valid, use_act):
    s = stride

    def kernel(x_ref, w_ref, mask_ref, o_ref, patch_ref):
        # x_ref:     (1, s*s*cin_pad, lgrid_pad) bf16  phase-decomposed padded img
        # w_ref:     (TC, k*k*cin_pad)           bf16  rows match patch rows
        # mask_ref:  (1, lgrid_pad)              f32   1.0 at valid output pos
        # o_ref:     (1, TC, lgrid_pad)          out dtype
        # patch_ref: (k*k*cin_pad, lgrid_pad)    bf16  fused im2col scratch

        # ---- in-kernel im2col: one full-width, lane-shifted row-block per tap
        for i in range(k):
            for j in range(k):
                t = i * k + j
                ph = (i % s) * s + (j % s)        # source phase block
                shift = (i // s) * wg + (j // s)  # stride-1 shift inside phase
                dst = pl.ds(t * cin_pad, cin_pad)
                src = pl.ds(ph * cin_pad, cin_pad)
                if shift == 0:
                    patch_ref[dst, :] = x_ref[0, src, :]
                else:
                    # Do the (possibly odd) lane shift on f32 so no packed-bf16
                    # odd-offset relayout is needed; wrapped tail lanes only
                    # ever map to invalid (masked-out) output positions.
                    row = x_ref[0, src, :].astype(jnp.float32)
                    patch_ref[dst, :] = jnp.roll(
                        row, -shift, axis=1).astype(patch_ref.dtype)

        # ---- one MXU contraction: (TC, K) x (K, HWgrid) -> f32 ----
        acc = jnp.dot(w_ref[...], patch_ref[...],
                      preferred_element_type=jnp.float32)

        # ---- InstanceNorm2d(affine=False) over valid spatial positions ----
        valid = mask_ref[...] != 0.0                       # (1, lgrid_pad)
        inv_n = 1.0 / float(n_valid)
        ssum = jnp.sum(jnp.where(valid, acc, 0.0), axis=1, keepdims=True)
        ssq = jnp.sum(jnp.where(valid, acc * acc, 0.0), axis=1, keepdims=True)
        mean = ssum * inv_n
        var = jnp.maximum(ssq * inv_n - mean * mean, 0.0)
        inv_std = lax.rsqrt(var + EPS)                     # EUP slot
        y = (acc - mean) * inv_std
        if use_act:
            y = jnp.maximum(y, 0.0)
        o_ref[0] = y.astype(o_ref.dtype)

    return kernel


def conv_block(x, weight, bias=None, *, kernel_size, padding, stride,
               use_act=True, out_dtype=None):
    """ConvBlock forward. x: (N, Cin, H, W), weight: (Cout, Cin, k, k).

    `bias` is accepted for API parity but unused: InstanceNorm2d(affine=False)
    subtracts the per-(n, c) mean over the full spatial extent, so a
    per-channel conv bias cancels exactly.
    """
    del bias
    N, Cin, H, W = x.shape
    Cout = weight.shape[0]
    k = int(kernel_size)
    s = int(stride)
    if out_dtype is None:
        out_dtype = x.dtype
    assert padding < H and padding < W, "reflect padding requires pad < H, W"

    # ---- host-side layout glue (cheap XLA ops) ----
    xb = x.astype(jnp.bfloat16)
    if padding > 0:
        xb = jnp.pad(xb, ((0, 0), (0, 0), (padding, padding),
                          (padding, padding)), mode="reflect")
    Hp, Wp = H + 2 * padding, W + 2 * padding
    H_out = (Hp - k) // s + 1
    W_out = (Wp - k) // s + 1

    # Phase (space-to-depth) decomposition by the stride: the kernel then only
    # does stride-1 shifted-window reads.  Filler rows/cols (pad to a multiple
    # of s) are never read by valid output positions.
    Hg, Wg = -(-Hp // s), -(-Wp // s)
    if Hg * s != Hp or Wg * s != Wp:
        xb = jnp.pad(xb, ((0, 0), (0, 0), (0, Hg * s - Hp), (0, Wg * s - Wp)))
    xb = xb.reshape(N, Cin, Hg, s, Wg, s).transpose(0, 3, 5, 1, 2, 4)
    # xb: (N, s, s, Cin, Hg, Wg)

    Cin_pad = _round_up(Cin, 8)          # aligned sublane blocks in the kernel
    if Cin_pad != Cin:
        xb = jnp.pad(xb, ((0, 0), (0, 0), (0, 0), (0, Cin_pad - Cin),
                          (0, 0), (0, 0)))
    Lgrid = Hg * Wg
    Lgrid_pad = _round_up(Lgrid, 128)    # lane-dense, unmasked output stores
    xb = xb.reshape(N, s * s * Cin_pad, Lgrid)
    if Lgrid_pad != Lgrid:
        xb = jnp.pad(xb, ((0, 0), (0, 0), (0, Lgrid_pad - Lgrid)))

    # Weight matrix: rows tap-major / channel-minor to match the patch rows.
    K = k * k * Cin_pad
    Cout_pad = _round_up(Cout, 8)
    w_mat = jnp.transpose(weight, (0, 2, 3, 1)).astype(jnp.bfloat16)
    w_mat = jnp.pad(w_mat, ((0, Cout_pad - Cout), (0, 0), (0, 0),
                            (0, Cin_pad - Cin)))
    w_mat = w_mat.reshape(Cout_pad, K)

    # Valid-output-position mask over the flattened (Hg, Wg) grid.
    pos = np.arange(Lgrid_pad)
    mask_np = ((pos % Wg < W_out) & (pos < H_out * Wg)).astype(np.float32)
    mask = jnp.asarray(mask_np.reshape(1, Lgrid_pad))

    # Cout tiling: second "parallel" grid axis (keeps v7x's 2 TensorCores busy
    # even at N == 1 and shrinks the resident accumulator).
    if Cout_pad > 128 and Cout_pad % 128 == 0:
        TC = 128
    else:
        TC = Cout_pad
    n_ct = Cout_pad // TC

    kernel = _make_convblock_kernel(k, s, Wg, Cin_pad, Lgrid_pad,
                                    H_out * W_out, use_act)

    # Generation-aware VMEM limit (do not request v7x's entire 64 MiB).
    out_isize = jnp.dtype(out_dtype).itemsize
    in_block = s * s * Cin_pad * Lgrid_pad * 2
    w_block = TC * K * 2
    out_block = TC * Lgrid_pad * out_isize
    need = (2 * (in_block + w_block + out_block)     # double-buffered I/O
            + K * Lgrid_pad * 2                      # patch scratch
            + 2 * TC * Lgrid_pad * 4                 # f32 acc / epilogue temps
            + (4 << 20))                             # slack
    try:
        cap = pltpu.get_tpu_info().vmem_capacity_bytes
    except Exception:
        cap = 64 << 20                               # conservative (v7x core)
    vmem_limit = int(min(max(need, 32 << 20), (cap * 3) // 4))

    flops = 2 * N * Cout * Cin * k * k * H_out * W_out
    bytes_accessed = (xb.size * 2 + w_mat.size * 2
                      + N * Cout_pad * Lgrid_pad * out_isize)

    out = pl.pallas_call(
        kernel,
        out_shape=jax.ShapeDtypeStruct((N, Cout_pad, Lgrid_pad), out_dtype),
        grid_spec=pltpu.PrefetchScalarGridSpec(
            num_scalar_prefetch=0,
            grid=(N, n_ct),
            in_specs=[
                # Full phase-decomposed image per batch element (re-fetched
                # only when n changes; spatial on lanes).
                pl.BlockSpec((1, s * s * Cin_pad, Lgrid_pad),
                             lambda n, c: (n, 0, 0)),
                # Weight tile for this Cout block.
                pl.BlockSpec((TC, K), lambda n, c: (c, 0)),
                # Valid-position mask (constant -> fetched once).
                pl.BlockSpec((1, Lgrid_pad), lambda n, c: (0, 0)),
            ],
            out_specs=pl.BlockSpec((1, TC, Lgrid_pad), lambda n, c: (n, c, 0)),
            scratch_shapes=[pltpu.VMEM((K, Lgrid_pad), jnp.bfloat16)],
        ),
        compiler_params=pltpu.CompilerParams(
            dimension_semantics=("parallel", "parallel"),
            vmem_limit_bytes=vmem_limit),
        cost_estimate=pl.CostEstimate(flops=flops,
                                      transcendentals=N * Cout,
                                      bytes_accessed=bytes_accessed),
    )(xb, w_mat, mask)

    # Strip lane padding / invalid grid columns / channel padding.  Cheap XLA
    # slice on the host side; keeps in-kernel stores lane-dense & unmasked.
    out = out[:, :Cout, :Lgrid].reshape(N, Cout, Hg, Wg)[:, :, :H_out, :W_out]
    return out


def _reference(x, weight, bias, *, kernel_size, padding, stride, use_act=True):
    # Pure-JAX f32 reference matching the PyTorch module (incl. conv bias).
    xp = jnp.pad(x, ((0, 0), (0, 0), (padding, padding), (padding, padding)),
                 mode="reflect")
    y = lax.conv_general_dilated(
        xp.astype(jnp.float32), weight.astype(jnp.float32),
        window_strides=(stride, stride), padding="VALID",
        dimension_numbers=("NCHW", "OIHW", "NCHW"))
    y = y + bias.reshape(1, -1, 1, 1)
    mean = jnp.mean(y, axis=(2, 3), keepdims=True)
    var = jnp.mean((y - mean) ** 2, axis=(2, 3), keepdims=True)
    y = (y - mean) / jnp.sqrt(var + EPS)
    return jnp.maximum(y, 0.0) if use_act else y


if __name__ == "__main__":
    key = jax.random.PRNGKey(0)
    k_x, k_w, k_b = jax.random.split(key, 3)

    # ConvBlock(in_channels=4, out_channels=8, kernel_size=3, padding=1)
    N, Cin, H, W = 2, 4, 16, 16
    Cout, ksz, pad = 8, 3, 1

    x = jax.random.normal(k_x, (N, Cin, H, W), dtype=jnp.float32)
    fan_in = Cin * ksz * ksz
    bound = 1.0 / np.sqrt(fan_in)
    weight = jax.random.uniform(k_w, (Cout, Cin, ksz, ksz),
                                minval=-bound, maxval=bound, dtype=jnp.float32)
    bias = jax.random.uniform(k_b, (Cout,),
                              minval=-bound, maxval=bound, dtype=jnp.float32)

    # stride 1, ReLU.
    out = conv_block(x, weight, bias, kernel_size=ksz, padding=pad, stride=1,
                     use_act=True)
    out = jax.block_until_ready(out)
    ref = _reference(x, weight, bias, kernel_size=ksz, padding=pad, stride=1,
                     use_act=True)
    assert out.shape == (N, Cout, H, W)
    # bf16 matmul operands (f32 accumulation) -> loosened tolerance.
    assert np.allclose(np.asarray(out), np.asarray(ref), atol=3e-2, rtol=3e-2)

    # stride 1, Identity (use_act=False).
    out2 = conv_block(x, weight, bias, kernel_size=ksz, padding=pad, stride=1,
                      use_act=False)
    out2 = jax.block_until_ready(out2)
    ref2 = _reference(x, weight, bias, kernel_size=ksz, padding=pad, stride=1,
                      use_act=False)
    assert np.allclose(np.asarray(out2), np.asarray(ref2), atol=3e-2, rtol=3e-2)

    # stride 2 down-sampling block (exercises the phase-decomposition path).
    out3 = conv_block(x, weight, bias, kernel_size=ksz, padding=pad, stride=2,
                      use_act=True)
    out3 = jax.block_until_ready(out3)
    ref3 = _reference(x, weight, bias, kernel_size=ksz, padding=pad, stride=2,
                      use_act=True)
    assert out3.shape == (N, Cout, H // 2, W // 2)
    assert np.allclose(np.asarray(out3), np.asarray(ref3), atol=3e-2, rtol=3e-2)

    print("KERNEL_OK")
</pallas_src>

<mosaic_0001>
module attributes {stable_mosaic.version = 11 : i64} {
  func.func @kernel(%arg0: i32, %arg1: i32, %arg2: memref<1x8x384xbf16, #tpu.memory_space<vmem>>, %arg3: memref<8x72xbf16, #tpu.memory_space<vmem>>, %arg4: memref<1x384xf32, #tpu.memory_space<vmem>>, %arg5: memref<1x8x384xf32, #tpu.memory_space<vmem>>, %arg6: memref<72x384xbf16, #tpu.memory_space<vmem>>) attributes {dimension_semantics = [#tpu.dimension_semantics<parallel>, #tpu.dimension_semantics<parallel>], iteration_bounds = array<i64: 2, 1>, scalar_prefetch = 0 : i64, scratch_operands = 1 : i64, tpu.core_type = #tpu.core_type<tc>, window_params = [{transform_indices = @transform_0, window_bounds = array<i64: 1, 8, 384>}, {transform_indices = @transform_1, window_bounds = array<i64: 8, 72>}, {pipeline_mode = #tpu.pipeline_mode<synchronous>, transform_indices = @transform_2, window_bounds = array<i64: 1, 384>}, {transform_indices = @transform_3, window_bounds = array<i64: 1, 8, 384>}]} {
    %c0 = arith.constant 0 : index
    %c0_0 = arith.constant 0 : index
    %c0_1 = arith.constant 0 : index
    %0 = vector.load %arg2[%c0, %c0_0, %c0_1] : memref<1x8x384xbf16, #tpu.memory_space<vmem>>, vector<1x8x384xbf16>
    %1 = vector.shape_cast %0 : vector<1x8x384xbf16> to vector<8x384xbf16>
    %c0_2 = arith.constant 0 : index
    %c0_3 = arith.constant 0 : index
    %2 = vector.load %arg6[%c0_2, %c0_3] : memref<72x384xbf16, #tpu.memory_space<vmem>>, vector<8x384xbf16>
    tpu.vector_store %arg6[%c0_2, %c0_3], %1 {strides = array<i32>} : memref<72x384xbf16, #tpu.memory_space<vmem>>, vector<8x384xbf16>,
    %c0_4 = arith.constant 0 : index
    %c0_5 = arith.constant 0 : index
    %c0_6 = arith.constant 0 : index
    %3 = vector.load %arg2[%c0_4, %c0_5, %c0_6] : memref<1x8x384xbf16, #tpu.memory_space<vmem>>, vector<1x8x384xbf16>
    %4 = vector.shape_cast %3 : vector<1x8x384xbf16> to vector<8x384xbf16>
    %5 = arith.extf %4 : vector<8x384xbf16> to vector<8x384xf32>
    %6 = vector.extract_strided_slice %5 {offsets = [0, 1], sizes = [8, 383], strides = [1, 1]} : vector<8x384xf32> to vector<8x383xf32>
    %7 = vector.extract_strided_slice %5 {offsets = [0, 0], sizes = [8, 1], strides = [1, 1]} : vector<8x384xf32> to vector<8x1xf32>
    %8 = tpu.concatenate %6, %7 in 1 : vector<8x383xf32>, vector<8x1xf32> -> vector<8x384xf32>
    %9 = arith.truncf %8 : vector<8x384xf32> to vector<8x384xbf16>
    %c8 = arith.constant 8 : index
    %c0_7 = arith.constant 0 : index
    %10 = vector.load %arg6[%c8, %c0_7] : memref<72x384xbf16, #tpu.memory_space<vmem>>, vector<8x384xbf16>
    tpu.vector_store %arg6[%c8, %c0_7], %9 {strides = array<i32>} : memref<72x384xbf16, #tpu.memory_space<vmem>>, vector<8x384xbf16>,
    %c0_8 = arith.constant 0 : index
    %c0_9 = arith.constant 0 : index
    %c0_10 = arith.constant 0 : index
    %11 = vector.load %arg2[%c0_8, %c0_9, %c0_10] : memref<1x8x384xbf16, #tpu.memory_space<vmem>>, vector<1x8x384xbf16>
    %12 = vector.shape_cast %11 : vector<1x8x384xbf16> to vector<8x384xbf16>
    %13 = arith.extf %12 : vector<8x384xbf16> to vector<8x384xf32>
    %14 = vector.extract_strided_slice %13 {offsets = [0, 2], sizes = [8, 382], strides = [1, 1]} : vector<8x384xf32> to vector<8x382xf32>
    %15 = vector.extract_strided_slice %13 {offsets = [0, 0], sizes = [8, 2], strides = [1, 1]} : vector<8x384xf32> to vector<8x2xf32>
    %16 = tpu.concatenate %14, %15 in 1 : vector<8x382xf32>, vector<8x2xf32> -> vector<8x384xf32>
    %17 = arith.truncf %16 : vector<8x384xf32> to vector<8x384xbf16>
    %c16 = arith.constant 16 : index
    %c0_11 = arith.constant 0 : index
    %18 = vector.load %arg6[%c16, %c0_11] : memref<72x384xbf16, #tpu.memory_space<vmem>>, vector<8x384xbf16>
    tpu.vector_store %arg6[%c16, %c0_11], %17 {strides = array<i32>} : memref<72x384xbf16, #tpu.memory_space<vmem>>, vector<8x384xbf16>,
    %c0_12 = arith.constant 0 : index
    %c0_13 = arith.constant 0 : index
    %c0_14 = arith.constant 0 : index
    %19 = vector.load %arg2[%c0_12, %c0_13, %c0_14] : memref<1x8x384xbf16, #tpu.memory_space<vmem>>, vector<1x8x384xbf16>
    %20 = vector.shape_cast %19 : vector<1x8x384xbf16> to vector<8x384xbf16>
    %21 = arith.extf %20 : vector<8x384xbf16> to vector<8x384xf32>
    %22 = vector.extract_strided_slice %21 {offsets = [0, 18], sizes = [8, 366], strides = [1, 1]} : vector<8x384xf32> to vector<8x366xf32>
    %23 = vector.extract_strided_slice %21 {offsets = [0, 0], sizes = [8, 18], strides = [1, 1]} : vector<8x384xf32> to vector<8x18xf32>
    %24 = tpu.concatenate %22, %23 in 1 : vector<8x366xf32>, vector<8x18xf32> -> vector<8x384xf32>
    %25 = arith.truncf %24 : vector<8x384xf32> to vector<8x384xbf16>
    %c24 = arith.constant 24 : index
    %c0_15 = arith.constant 0 : index
    %26 = vector.load %arg6[%c24, %c0_15] : memref<72x384xbf16, #tpu.memory_space<vmem>>, vector<8x384xbf16>
    tpu.vector_store %arg6[%c24, %c0_15], %25 {strides = array<i32>} : memref<72x384xbf16, #tpu.memory_space<vmem>>, vector<8x384xbf16>,
    %c0_16 = arith.constant 0 : index
    %c0_17 = arith.constant 0 : index
    %c0_18 = arith.constant 0 : index
    %27 = vector.load %arg2[%c0_16, %c0_17, %c0_18] : memref<1x8x384xbf16, #tpu.memory_space<vmem>>, vector<1x8x384xbf16>
    %28 = vector.shape_cast %27 : vector<1x8x384xbf16> to vector<8x384xbf16>
    %29 = arith.extf %28 : vector<8x384xbf16> to vector<8x384xf32>
    %30 = vector.extract_strided_slice %29 {offsets = [0, 19], sizes = [8, 365], strides = [1, 1]} : vector<8x384xf32> to vector<8x365xf32>
    %31 = vector.extract_strided_slice %29 {offsets = [0, 0], sizes = [8, 19], strides = [1, 1]} : vector<8x384xf32> to vector<8x19xf32>
    %32 = tpu.concatenate %30, %31 in 1 : vector<8x365xf32>, vector<8x19xf32> -> vector<8x384xf32>
    %33 = arith.truncf %32 : vector<8x384xf32> to vector<8x384xbf16>
    %c32 = arith.constant 32 : index
    %c0_19 = arith.constant 0 : index
    %34 = vector.load %arg6[%c32, %c0_19] : memref<72x384xbf16, #tpu.memory_space<vmem>>, vector<8x384xbf16>
    tpu.vector_store %arg6[%c32, %c0_19], %33 {strides = array<i32>} : memref<72x384xbf16, #tpu.memory_space<vmem>>, vector<8x384xbf16>,
    %c0_20 = arith.constant 0 : index
    %c0_21 = arith.constant 0 : index
    %c0_22 = arith.constant 0 : index
    %35 = vector.load %arg2[%c0_20, %c0_21, %c0_22] : memref<1x8x384xbf16, #tpu.memory_space<vmem>>, vector<1x8x384xbf16>
    %36 = vector.shape_cast %35 : vector<1x8x384xbf16> to vector<8x384xbf16>
    %37 = arith.extf %36 : vector<8x384xbf16> to vector<8x384xf32>
    %38 = vector.extract_strided_slice %37 {offsets = [0, 20], sizes = [8, 364], strides = [1, 1]} : vector<8x384xf32> to vector<8x364xf32>
    %39 = vector.extract_strided_slice %37 {offsets = [0, 0], sizes = [8, 20], strides = [1, 1]} : vector<8x384xf32> to vector<8x20xf32>
    %40 = tpu.concatenate %38, %39 in 1 : vector<8x364xf32>, vector<8x20xf32> -> vector<8x384xf32>
    %41 = arith.truncf %40 : vector<8x384xf32> to vector<8x384xbf16>
    %c40 = arith.constant 40 : index
    %c0_23 = arith.constant 0 : index
    %42 = vector.load %arg6[%c40, %c0_23] : memref<72x384xbf16, #tpu.memory_space<vmem>>, vector<8x384xbf16>
    tpu.vector_store %arg6[%c40, %c0_23], %41 {strides = array<i32>} : memref<72x384xbf16, #tpu.memory_space<vmem>>, vector<8x384xbf16>,
    %c0_24 = arith.constant 0 : index
    %c0_25 = arith.constant 0 : index
    %c0_26 = arith.constant 0 : index
    %43 = vector.load %arg2[%c0_24, %c0_25, %c0_26] : memref<1x8x384xbf16, #tpu.memory_space<vmem>>, vector<1x8x384xbf16>
    %44 = vector.shape_cast %43 : vector<1x8x384xbf16> to vector<8x384xbf16>
    %45 = arith.extf %44 : vector<8x384xbf16> to vector<8x384xf32>
    %46 = vector.extract_strided_slice %45 {offsets = [0, 36], sizes = [8, 348], strides = [1, 1]} : vector<8x384xf32> to vector<8x348xf32>
    %47 = vector.extract_strided_slice %45 {offsets = [0, 0], sizes = [8, 36], strides = [1, 1]} : vector<8x384xf32> to vector<8x36xf32>
    %48 = tpu.concatenate %46, %47 in 1 : vector<8x348xf32>, vector<8x36xf32> -> vector<8x384xf32>
    %49 = arith.truncf %48 : vector<8x384xf32> to vector<8x384xbf16>
    %c48 = arith.constant 48 : index
    %c0_27 = arith.constant 0 : index
    %50 = vector.load %arg6[%c48, %c0_27] : memref<72x384xbf16, #tpu.memory_space<vmem>>, vector<8x384xbf16>
    tpu.vector_store %arg6[%c48, %c0_27], %49 {strides = array<i32>} : memref<72x384xbf16, #tpu.memory_space<vmem>>, vector<8x384xbf16>,
    %c0_28 = arith.constant 0 : index
    %c0_29 = arith.constant 0 : index
    %c0_30 = arith.constant 0 : index
    %51 = vector.load %arg2[%c0_28, %c0_29, %c0_30] : memref<1x8x384xbf16, #tpu.memory_space<vmem>>, vector<1x8x384xbf16>
    %52 = vector.shape_cast %51 : vector<1x8x384xbf16> to vector<8x384xbf16>
    %53 = arith.extf %52 : vector<8x384xbf16> to vector<8x384xf32>
    %54 = vector.extract_strided_slice %53 {offsets = [0, 37], sizes = [8, 347], strides = [1, 1]} : vector<8x384xf32> to vector<8x347xf32>
    %55 = vector.extract_strided_slice %53 {offsets = [0, 0], sizes = [8, 37], strides = [1, 1]} : vector<8x384xf32> to vector<8x37xf32>
    %56 = tpu.concatenate %54, %55 in 1 : vector<8x347xf32>, vector<8x37xf32> -> vector<8x384xf32>
    %57 = arith.truncf %56 : vector<8x384xf32> to vector<8x384xbf16>
    %c56 = arith.constant 56 : index
    %c0_31 = arith.constant 0 : index
    %58 = vector.load %arg6[%c56, %c0_31] : memref<72x384xbf16, #tpu.memory_space<vmem>>, vector<8x384xbf16>
    tpu.vector_store %arg6[%c56, %c0_31], %57 {strides = array<i32>} : memref<72x384xbf16, #tpu.memory_space<vmem>>, vector<8x384xbf16>,
    %c0_32 = arith.constant 0 : index
    %c0_33 = arith.constant 0 : index
    %c0_34 = arith.constant 0 : index
    %59 = vector.load %arg2[%c0_32, %c0_33, %c0_34] : memref<1x8x384xbf16, #tpu.memory_space<vmem>>, vector<1x8x384xbf16>
    %60 = vector.shape_cast %59 : vector<1x8x384xbf16> to vector<8x384xbf16>
    %61 = arith.extf %60 : vector<8x384xbf16> to vector<8x384xf32>
    %62 = vector.extract_strided_slice %61 {offsets = [0, 38], sizes = [8, 346], strides = [1, 1]} : vector<8x384xf32> to vector<8x346xf32>
    %63 = vector.extract_strided_slice %61 {offsets = [0, 0], sizes = [8, 38], strides = [1, 1]} : vector<8x384xf32> to vector<8x38xf32>
    %64 = tpu.concatenate %62, %63 in 1 : vector<8x346xf32>, vector<8x38xf32> -> vector<8x384xf32>
    %65 = arith.truncf %64 : vector<8x384xf32> to vector<8x384xbf16>
    %c64 = arith.constant 64 : index
    %c0_35 = arith.constant 0 : index
    %66 = vector.load %arg6[%c64, %c0_35] : memref<72x384xbf16, #tpu.memory_space<vmem>>, vector<8x384xbf16>
    tpu.vector_store %arg6[%c64, %c0_35], %65 {strides = array<i32>} : memref<72x384xbf16, #tpu.memory_space<vmem>>, vector<8x384xbf16>,
    %c0_36 = arith.constant 0 : index
    %c0_37 = arith.constant 0 : index
    %67 = vector.load %arg3[%c0_36, %c0_37] : memref<8x72xbf16, #tpu.memory_space<vmem>>, vector<8x72xbf16>
    %c0_38 = arith.constant 0 : index
    %c0_39 = arith.constant 0 : index
    %68 = vector.load %arg6[%c0_38, %c0_39] : memref<72x384xbf16, #tpu.memory_space<vmem>>, vector<72x384xbf16>
    %cst = arith.constant dense<0.000000e+00> : vector<8x384xf32>
    %69 = tpu.matmul %67, %68, %cst {dimension_numbers = #tpu.dot_dimension_numbers<[1], [0], [0], [1], [0, 0, 1, 1], [], []>} : vector<8x72xbf16>, vector<72x384xbf16>, vector<8x384xf32> -> vector<8x384xf32>
    %c0_40 = arith.constant 0 : index
    %c0_41 = arith.constant 0 : index
    %70 = vector.load %arg4[%c0_40, %c0_41] : memref<1x384xf32, #tpu.memory_space<vmem>>, vector<1x384xf32>
    %cst_42 = arith.constant 0.000000e+00 : f32
    %71 = vector.broadcast %cst_42 : f32 to vector<1x384xf32>
    %72 = arith.cmpf one, %70, %71 : vector<1x384xf32>
    %cst_43 = arith.constant 0.000000e+00 : f32
    %73 = vector.shape_cast %72 : vector<1x384xi1> to vector<1x384xi1>
    %74 = vector.broadcast %73 : vector<1x384xi1> to vector<8x384xi1>
    %75 = vector.broadcast %cst_43 : f32 to vector<8x384xf32>
    %76 = arith.select %74, %69, %75 : vector<8x384xi1>, vector<8x384xf32>
    %cst_44 = arith.constant dense<0.000000e+00> : vector<8xf32>
    %77 = vector.multi_reduction <add>, %76, %cst_44 [1] : vector<8x384xf32> to vector<8xf32>
    %78 = vector.shape_cast %77 : vector<8xf32> to vector<8x1xf32>
    %79 = arith.mulf %69, %69 : vector<8x384xf32>
    %cst_45 = arith.constant 0.000000e+00 : f32
    %80 = vector.shape_cast %72 : vector<1x384xi1> to vector<1x384xi1>
    %81 = vector.broadcast %80 : vector<1x384xi1> to vector<8x384xi1>
    %82 = vector.broadcast %cst_45 : f32 to vector<8x384xf32>
    %83 = arith.select %81, %79, %82 : vector<8x384xi1>, vector<8x384xf32>
    %cst_46 = arith.constant dense<0.000000e+00> : vector<8xf32>
    %84 = vector.multi_reduction <add>, %83, %cst_46 [1] : vector<8x384xf32> to vector<8xf32>
    %85 = vector.shape_cast %84 : vector<8xf32> to vector<8x1xf32>
    %cst_47 = arith.constant 3.906250e-03 : f32
    %86 = vector.broadcast %cst_47 : f32 to vector<8x1xf32>
    %87 = arith.mulf %78, %86 : vector<8x1xf32>
    %cst_48 = arith.constant 3.906250e-03 : f32
    %88 = vector.broadcast %cst_48 : f32 to vector<8x1xf32>
    %89 = arith.mulf %85, %88 : vector<8x1xf32>
    %90 = arith.mulf %87, %87 : vector<8x1xf32>
    %91 = arith.subf %89, %90 : vector<8x1xf32>
    %cst_49 = arith.constant 0.000000e+00 : f32
    %92 = vector.broadcast %cst_49 : f32 to vector<8x1xf32>
    %93 = arith.maximumf %91, %92 : vector<8x1xf32>
    %cst_50 = arith.constant 9.99999974E-6 : f32
    %94 = vector.broadcast %cst_50 : f32 to vector<8x1xf32>
    %95 = arith.addf %93, %94 : vector<8x1xf32>
    %96 = math.rsqrt %95 : vector<8x1xf32>
    %97 = vector.broadcast %87 : vector<8x1xf32> to vector<8x384xf32>
    %98 = arith.subf %69, %97 : vector<8x384xf32>
    %99 = vector.broadcast %96 : vector<8x1xf32> to vector<8x384xf32>
    %100 = arith.mulf %98, %99 : vector<8x384xf32>
    %cst_51 = arith.constant 0.000000e+00 : f32
    %101 = vector.broadcast %cst_51 : f32 to vector<8x384xf32>
    %102 = arith.maximumf %100, %101 : vector<8x384xf32>
    %c0_52 = arith.constant 0 : index
    %c0_53 = arith.constant 0 : index
    %c0_54 = arith.constant 0 : index
    %103 = vector.load %arg5[%c0_52, %c0_53, %c0_54] : memref<1x8x384xf32, #tpu.memory_space<vmem>>, vector<1x8x384xf32>
    %104 = vector.shape_cast %103 : vector<1x8x384xf32> to vector<8x384xf32>
    %105 = vector.shape_cast %102 : vector<8x384xf32> to vector<1x8x384xf32>
    tpu.vector_store %arg5[%c0_52, %c0_53, %c0_54], %105 {strides = array<i32>} : memref<1x8x384xf32, #tpu.memory_space<vmem>>, vector<1x8x384xf32>,
    return
  }
  func.func @transform_0(%arg0: i32, %arg1: i32) -> (i32, i32, i32) {
    %c0_i32 = arith.constant 0 : i32
    %c0_i32_0 = arith.constant 0 : i32
    %c0_i32_1 = arith.constant 0 : i32
    return %arg0, %c0_i32, %c0_i32_0 : i32, i32, i32
  }
  func.func @transform_1(%arg0: i32, %arg1: i32) -> (i32, i32) {
    %c0_i32 = arith.constant 0 : i32
    %c0_i32_0 = arith.constant 0 : i32
    return %arg1, %c0_i32 : i32, i32
  }
  func.func @transform_2(%arg0: i32, %arg1: i32) -> (i32, i32) {
    %c0_i32 = arith.constant 0 : i32
    %c0_i32_0 = arith.constant 0 : i32
    %c0_i32_1 = arith.constant 0 : i32
    return %c0_i32, %c0_i32_0 : i32, i32
  }
  func.func @transform_3(%arg0: i32, %arg1: i32) -> (i32, i32, i32) {
    %c0_i32 = arith.constant 0 : i32
    %c0_i32_0 = arith.constant 0 : i32
    return %arg0, %arg1, %c0_i32 : i32, i32, i32
  }
}

</mosaic_0001>

<llo_original>
// kernel: tpu_custom_call.1
$region0: #{tpu_custom_call.1}
  #allocation0 [shape = 'u32[]', space=smem, size = 0x4, offset = 0x4, fixed_abs, tag = 'smem constant byte address 0x4 - core index']
  #allocation1 [shape = 'u32[144,128]{1,0:T(1,128)}', space=vmem, size = 0x12000, scoped, tag = 'internal scratch']
  #allocation2 [shape = 'bf16[72,384]{1,0:T(8,128)(2,1)}', space=vmem, size = 0xd800, scoped, tag = 'scratch operand']
  %s0 = inlined_call_operand.hbm [shape: bf16[2,8,384], index: 0, kind: input, shape index: {}]
  %s1 = inlined_call_operand.hbm [shape: bf16[8,72], index: 1, kind: input, shape index: {}]
  %s2 = inlined_call_operand.vmem [shape: f32[1,384], index: 2, kind: input, shape index: {}]
  %s3 = inlined_call_operand.hbm [shape: f32[2,8,384], index: 3, kind: output, shape index: {}]
  %s4 = sld [smem:[#allocation0]]
  $region53: #{tpu_custom_call.1} parent=0
    _
  %s6 = ssub.s32 1, %s4
  %s7 = scalar_select 0, %s6, %s4
  $region1: #{tpu_custom_call.1} parent=0
    #allocation3 [shape = 'u8[12288]{0}', space=vmem, size = 0x3000, scoped, tag = 'input window, operand 0']
    #allocation4 [shape = 's32[2]{0}', space=sflag, size = 0x8, scoped, tag = 'scoped memory for tpu_custom_call.1']
    #allocation5 [shape = 's32[2]{0}', space=sflag, size = 0x8, scoped, tag = 'scoped memory for tpu_custom_call.1']
    #allocation6 [shape = 'u8[2048]{0}', space=vmem, size = 0x800, scoped, tag = 'input window, operand 1, single buffered']
    #allocation7 [shape = 's32[1]{0}', space=sflag, size = 0x4, scoped, tag = 'scoped memory for tpu_custom_call.1']
    #allocation8 [shape = 'u8[24576]{0}', space=vmem, size = 0x6000, scoped, tag = 'output window, operand 0']
    %8 = vsyncpa [#allocation4], 0
    %s9 = scalar_lea.sflag [#allocation4], 1
    %10 = vsyncpa %s9, 0
    %11 = vsyncpa [#allocation7], 0
    %12 = vsyncpa [#allocation5], 0
    %s13 = scalar_lea.sflag [#allocation5], 1
    %14 = vsyncpa %s13, 0
    loop: start=0, step=1, limit=4
    $region2: #{tpu_custom_call.1} parent=1 // loop_pre_header
      _
    $region3: #{tpu_custom_call.1} parent=1 // loop_header
      %s16 = sphi 0, %s20
      %p17 = scmp.ge.s32.totalorder %s16, 4
      %s23 = sphi 0, %s35
      %s24 = sphi 0, %s31
      %s25 = sphi 0, %s23
      %s26 = sphi 0, %s24
      %s27 = sphi 0, %s25
      %s28 = sphi 0, %s26
      %s38 = sphi 0, %s40
      %s41 = sphi 0, %s38
      %s42 = sphi 0, %s41
      %s58 = sphi 0, %s42
      %s64 = sphi 0, %s66
      %s67 = sphi 0, %s64
      %s68 = sphi 0, %s67
      %s84 = sphi 0, %s68
      %s88 = sphi 0, %s88
      %s90 = sphi 0, %s88
      %s91 = sphi 0, %s90
      %s105 = sphi 0, %s91
      %s113 = sphi 0, %s115
      %s116 = sphi 0, %s113
      %s117 = sphi 0, %s116
      %s133 = sphi 0, %s117
    $region4: #{tpu_custom_call.1} parent=1 // loop_header_branch
      %19 = sbr.rel (%p17) target = $region8
    $region5: #{tpu_custom_call.1} parent=1 // loop_body
      %s21 = ssub.s32 %s16, 1
      %s22 = ssub.s32 %s16, 2
      %s29 = sadd.s32 1, %s24
      %p30 = scmp.ge.s32.totalorder %s29, 1
      %s31 = scalar_select %p30, 0, %s29
      %s32 = sadd.s32 1, %s23
      %s33 = scalar_select %p30, %s32, %s23
      %p34 = scmp.ge.s32.totalorder %s33, 2
      %s35 = scalar_select %p34, 0, %s33
      %s36 = ssub.s32 %s23, %s35
      %p37 = scmp.eq.s32.totalorder %s36, 0
      %s39 = sadd.s32 %s38, 1
      %s40 = scalar_select %p37, %s38, %s39
      %p43 = pneg %p37
      %p44 = scmp.eq.s32.totalorder %s16, 1
      %p45 = por %p43, %p44
      %p46 = scmp.ne.s32.totalorder %s38, %s41
      %p47 = scmp.eq.s32.totalorder %s16, 0
      %p48 = por %p46, %p47
      %p49 = scmp.ne.s32.totalorder %s38, %s41
      %p50 = scmp.eq.s32.totalorder %s21, 1
      %p51 = por %p49, %p50
      %p52 = scmp.ne.s32.totalorder %s41, %s42
      %p53 = scmp.eq.s32.totalorder %s21, 0
      %p54 = por %p52, %p53
      %p55 = scmp.ne.s32.totalorder %s41, %s42
      %p56 = scmp.eq.s32.totalorder %s22, 1
      %p57 = por %p55, %p56
      %p59 = scmp.ne.s32.totalorder %s42, %s58
      %p60 = scmp.eq.s32.totalorder %s22, 0
      %p61 = por %p59, %p60
      %s62 = ssub.s32 %s24, %s31
      %p63 = scmp.eq.s32.totalorder %s62, 0
      %s65 = sadd.s32 %s64, 1
      %s66 = scalar_select %p63, %s64, %s65
      %p69 = pneg %p63
      %p70 = scmp.eq.s32.totalorder %s16, 1
      %p71 = por %p69, %p70
      %p72 = scmp.ne.s32.totalorder %s64, %s67
      %p73 = scmp.eq.s32.totalorder %s16, 0
      %p74 = por %p72, %p73
      %p75 = scmp.ne.s32.totalorder %s64, %s67
      %p76 = scmp.eq.s32.totalorder %s21, 1
      %p77 = por %p75, %p76
      %p78 = scmp.ne.s32.totalorder %s67, %s68
      %p79 = scmp.eq.s32.totalorder %s21, 0
      %p80 = por %p78, %p79
      %p81 = scmp.ne.s32.totalorder %s67, %s68
      %p82 = scmp.eq.s32.totalorder %s22, 1
      %p83 = por %p81, %p82
      %p85 = scmp.ne.s32.totalorder %s68, %s84
      %p86 = scmp.eq.s32.totalorder %s22, 0
      %p87 = por %p85, %p86
      %s89 = sadd.s32 %s88, 1
      %p92 = scmp.eq.s32.totalorder %s16, 1
      %p93 = scmp.ne.s32.totalorder %s88, %s90
      %p94 = scmp.eq.s32.totalorder %s16, 0
      %p95 = por %p93, %p94
      %p96 = scmp.ne.s32.totalorder %s88, %s90
      %p97 = scmp.eq.s32.totalorder %s21, 1
      %p98 = por %p96, %p97
      %p99 = scmp.ne.s32.totalorder %s90, %s91
      %p100 = scmp.eq.s32.totalorder %s21, 0
      %p101 = por %p99, %p100
      %p102 = scmp.ne.s32.totalorder %s90, %s91
      %p103 = scmp.eq.s32.totalorder %s22, 1
      %p104 = por %p102, %p103
      %p106 = scmp.ne.s32.totalorder %s91, %s105
      %p107 = scmp.eq.s32.totalorder %s22, 0
      %p108 = por %p106, %p107
      %s109 = ssub.s32 %s23, %s35
      %s110 = ssub.s32 %s24, %s31
      %s111 = sor.u32 %s109, %s110
      %p112 = scmp.eq.s32.totalorder %s111, 0
      %s114 = sadd.s32 %s113, 1
      %s115 = scalar_select %p112, %s113, %s114
      %p118 = pneg %p112
      %p119 = scmp.eq.s32.totalorder %s16, 1
      %p120 = por %p118, %p119
      %p121 = scmp.ne.s32.totalorder %s113, %s116
      %p122 = scmp.eq.s32.totalorder %s16, 0
      %p123 = por %p121, %p122
      %p124 = scmp.ne.s32.totalorder %s113, %s116
      %p125 = scmp.eq.s32.totalorder %s21, 1
      %p126 = por %p124, %p125
      %p127 = scmp.ne.s32.totalorder %s116, %s117
      %p128 = scmp.eq.s32.totalorder %s21, 0
      %p129 = por %p127, %p128
      %p130 = scmp.ne.s32.totalorder %s116, %s117
      %p131 = scmp.eq.s32.totalorder %s22, 1
      %p132 = por %p130, %p131
      %p134 = scmp.ne.s32.totalorder %s117, %s133
      %p135 = scmp.eq.s32.totalorder %s22, 0
      %p136 = por %p134, %p135
      %p137 = scmp.le.s32.totalorder 1, %s16
      %p138 = scmp.lt.s32.totalorder %s16, 3
      %p139 = pnand %p137, %p138
      %p140 = pneg %p139
      // Predicated region
      $region9: #{tpu_custom_call.1} parent=5 // pred_check
        _
      $region10: #{tpu_custom_call.1} parent=5 // pred_check_branch
        %142 = sbr.rel (%p139) target = $region12
      $region11: #{tpu_custom_call.1} parent=5 // pred_region
        %s143 = ssub.s32 %s16, 1
        // Predicated region
        $region13: #{tpu_custom_call.1} parent=11 // pred_check
          %p144 = pneg %p80
        $region14: #{tpu_custom_call.1} parent=11 // pred_check_branch
          %146 = sbr.rel (%p144) target = $region16
        $region15: #{tpu_custom_call.1} parent=11 // pred_region
          %s148 = ssub.s32 64, 64
          %149 = vsyncadd [#allocation7], %s148
          %s150 = smul.addr %s26, 64
          %s151 = scalar_lea.hbm %s1, %s150
          %s153 = sshll.u32 [#allocation6], 4
          %s154 = int_to_ptr.vmem [resolvable:$true] %s153
          %156 = dma.hbm_to_vmem [thread:$0]  %s151, 64, %s154, [#allocation7]
        $region16: #{tpu_custom_call.1} parent=11 // pred_fallthru
          _
        // Predicated region
        $region17: #{tpu_custom_call.1} parent=11 // pred_check
          %p157 = pneg %p101
        $region18: #{tpu_custom_call.1} parent=11 // pred_check_branch
          %159 = sbr.rel (%p157) target = $region20
        $region19: #{tpu_custom_call.1} parent=11 // pred_region
          _
        $region20: #{tpu_custom_call.1} parent=11 // pred_fallthru
          _
      $region12: #{tpu_custom_call.1} parent=5 // pred_fallthru
        _
      %p160 = scmp.lt.s32.totalorder %s16, 2
      // Predicated region
      $region21: #{tpu_custom_call.1} parent=5 // pred_check
        %p161 = pneg %p160
      $region22: #{tpu_custom_call.1} parent=5 // pred_check_branch
        %163 = sbr.rel (%p161) target = $region24
      $region23: #{tpu_custom_call.1} parent=5 // pred_region
        // Predicated region
        $region25: #{tpu_custom_call.1} parent=23 // pred_check
          %p164 = pneg %p48
        $region26: #{tpu_custom_call.1} parent=23 // pred_check_branch
          %166 = sbr.rel (%p164) target = $region28
        $region27: #{tpu_custom_call.1} parent=23 // pred_region
          %s167 = sand.u32 %s38, 1
          %s168 = scalar_lea.sflag [#allocation4], %s167
          %s169 = sand.u32 %s38, 1
          %s170 = smul.addr %s169, 12
          %s171 = scalar_lea.vmem [#allocation3], %s170
          %s173 = ssub.s32 192, 192
          %174 = vsyncadd %s168, %s173
          %s175 = smul.addr %s23, 3
          %s176 = smul.addr %s175, 64
          %s177 = scalar_lea.hbm %s0, %s176
          %s179 = sshll.u32 %s171, 4
          %s180 = int_to_ptr.vmem [resolvable:$true] %s179
          %182 = dma.hbm_to_vmem [thread:$0]  %s177, 192, %s180, %s168
        $region28: #{tpu_custom_call.1} parent=23 // pred_fallthru
          _
      $region24: #{tpu_custom_call.1} parent=5 // pred_fallthru
        _
      %p183 = scmp.le.s32.totalorder 1, %s16
      %p184 = scmp.lt.s32.totalorder %s16, 3
      %p185 = pnand %p183, %p184
      %p186 = pneg %p185
      // Predicated region
      $region29: #{tpu_custom_call.1} parent=5 // pred_check
        _
      $region30: #{tpu_custom_call.1} parent=5 // pred_check_branch
        %188 = sbr.rel (%p185) target = $region32
      $region31: #{tpu_custom_call.1} parent=5 // pred_region
        %s189 = ssub.s32 %s16, 1
        %s190 = sand.u32 %s41, 1
        %s191 = scalar_lea.sflag [#allocation4], %s190
        %s192 = sand.u32 %s41, 1
        %s193 = smul.addr %s192, 12
        %s194 = scalar_lea.vmem [#allocation3], %s193
        // Predicated region
        $region33: #{tpu_custom_call.1} parent=31 // pred_check
          %p195 = pneg %p54
        $region34: #{tpu_custom_call.1} parent=31 // pred_check_branch
          %197 = sbr.rel (%p195) target = $region36
        $region35: #{tpu_custom_call.1} parent=31 // pred_region
          %198 = dma.done %s191, 192
        $region36: #{tpu_custom_call.1} parent=31 // pred_fallthru
          _
        // Predicated region
        $region37: #{tpu_custom_call.1} parent=31 // pred_check
          %p199 = pneg %p80
        $region38: #{tpu_custom_call.1} parent=31 // pred_check_branch
          %201 = sbr.rel (%p199) target = $region40
        $region39: #{tpu_custom_call.1} parent=31 // pred_region
          %202 = dma.done [#allocation7], 64
        $region40: #{tpu_custom_call.1} parent=31 // pred_fallthru
          _
        %s203 = sand.u32 %s41, 1
        %s204 = scalar_lea.sflag [#allocation4], %s203
        %s205 = sand.u32 %s41, 1
        %s206 = smul.addr %s205, 12
        %s207 = scalar_lea.vmem [#allocation3], %s206
        %p208 = pneg %p54
        %p209 = pneg %p51
        %p210 = pneg %p80
        %p211 = pneg %p77
        %p212 = pneg %p101
        %p213 = pneg %p98
        %p214 = pneg %p129
        %p215 = pneg %p126
        %s216 = sand.u32 %s116, 1
        %s217 = scalar_lea.sflag [#allocation5], %s216
        %s218 = sand.u32 %s116, 1
        %s219 = smul.addr %s218, 24
        %s220 = scalar_lea.vmem [#allocation8], %s219
        %v222 = vld [vmem:[%s194] sm:$0xff]
        %v223 = vld [vmem:[%s194 + $0x8] sm:$0xf]
        %224 = vst [vmem:[#allocation2] sm:$0xff] %v222
        %225 = vst [vmem:[#allocation2 + $0x8] sm:$0xf] %v223
        %v226 = vld [vmem:[%s194] sm:$0xff]
        %v227 = vld [vmem:[%s194 + $0x8] sm:$0xf]
        %v228 = vunpack.c.l.bf16 %v226
        %v229 = vunpack.c.h.bf16 %v226
        %v230 = vunpack.c.l.bf16 %v227
        %234 = vrot.lane.b32.xlu0 %v228, 127
        %v235 = vpop.permute.xlu0 %234
        %236 = vrot.lane.b32.xlu0 %v229, 127
        %v237 = vpop.permute.xlu0 %236
        %238 = vrot.lane.b32.xlu0 %v230, 127
        %v239 = vpop.permute.xlu0 %238
        %vm240 = vcmask 1039360
        %v241 = vsel %vm240, %v235, %v237
        %v242 = vsel %vm240, %v237, %v239
        %v247 = vsel %vm240, %v239, %v235
        %v248 = vpack.c.bf16 %v241, %v241
        %v249 = vpack.c.bf16 %v242, %v242
        %v250 = vpack.c.bf16 %v247, %v247
        %v254 = vunpack.c.l.b16 %v248
        %v255 = vunpack.c.l.b16 %v249
        %v256 = vunpack.c.l.b16 %v250
        %v257 = vpack.c.b16 %v255, %v254
        %v258 = vpack.c.b16 %v256, %v256
        %261 = vst [vmem:[#allocation2 + $0xc] sm:$0xff] %v257
        %262 = vst [vmem:[#allocation2 + $0x14] sm:$0xf] %v258
        %v263 = vld [vmem:[%s194] sm:$0xff]
        %v264 = vld [vmem:[%s194 + $0x8] sm:$0xf]
        %v265 = vunpack.c.l.bf16 %v263
        %v266 = vunpack.c.h.bf16 %v263
        %v267 = vunpack.c.l.bf16 %v264
        %271 = vrot.lane.b32.xlu0 %v265, 126
        %v272 = vpop.permute.xlu0 %271
        %273 = vrot.lane.b32.xlu0 %v266, 126
        %v274 = vpop.permute.xlu0 %273
        %275 = vrot.lane.b32.xlu0 %v267, 126
        %v276 = vpop.permute.xlu0 %275
        %vm277 = vcmask 1031168
        %v278 = vsel %vm277, %v272, %v274
        %v279 = vsel %vm277, %v274, %v276
        %v284 = vsel %vm277, %v276, %v272
        %v285 = vpack.c.bf16 %v278, %v278
        %v286 = vpack.c.bf16 %v279, %v279
        %v287 = vpack.c.bf16 %v284, %v284
        %v291 = vunpack.c.l.b16 %v285
        %v292 = vunpack.c.l.b16 %v286
        %v293 = vunpack.c.l.b16 %v287
        %v294 = vpack.c.b16 %v292, %v291
        %v295 = vpack.c.b16 %v293, %v293
        %298 = vst [vmem:[#allocation2 + $0x18] sm:$0xff] %v294
        %299 = vst [vmem:[#allocation2 + $0x20] sm:$0xf] %v295
        %v300 = vld [vmem:[%s194] sm:$0xff]
        %v301 = vld [vmem:[%s194 + $0x8] sm:$0xf]
        %v302 = vunpack.c.l.bf16 %v300
        %v303 = vunpack.c.h.bf16 %v300
        %v304 = vunpack.c.l.bf16 %v301
        %308 = vrot.lane.b32.xlu0 %v302, 110
        %v309 = vpop.permute.xlu0 %308
        %310 = vrot.lane.b32.xlu0 %v303, 110
        %v311 = vpop.permute.xlu0 %310
        %312 = vrot.lane.b32.xlu0 %v304, 110
        %v313 = vpop.permute.xlu0 %312
        %vm314 = vcmask 900096
        %v315 = vsel %vm314, %v309, %v311
        %v316 = vsel %vm314, %v311, %v313
        %v321 = vsel %vm314, %v313, %v309
        %v322 = vpack.c.bf16 %v315, %v315
        %v323 = vpack.c.bf16 %v316, %v316
        %v324 = vpack.c.bf16 %v321, %v321
        %v328 = vunpack.c.l.b16 %v322
        %v329 = vunpack.c.l.b16 %v323
        %v330 = vunpack.c.l.b16 %v324
        %v331 = vpack.c.b16 %v329, %v328
        %v332 = vpack.c.b16 %v330, %v330
        %335 = vst [vmem:[#allocation2 + $0x24] sm:$0xff] %v331
        %336 = vst [vmem:[#allocation2 + $0x2c] sm:$0xf] %v332
        %v337 = vld [vmem:[%s194] sm:$0xff]
        %v338 = vld [vmem:[%s194 + $0x8] sm:$0xf]
        %v339 = vunpack.c.l.bf16 %v337
        %v340 = vunpack.c.h.bf16 %v337
        %v341 = vunpack.c.l.bf16 %v338
        %345 = vrot.lane.b32.xlu0 %v339, 109
        %v346 = vpop.permute.xlu0 %345
        %347 = vrot.lane.b32.xlu0 %v340, 109
        %v348 = vpop.permute.xlu0 %347
        %349 = vrot.lane.b32.xlu0 %v341, 109
        %v350 = vpop.permute.xlu0 %349
        %vm351 = vcmask 891904
        %v352 = vsel %vm351, %v346, %v348
        %v353 = vsel %vm351, %v348, %v350
        %v358 = vsel %vm351, %v350, %v346
        %v359 = vpack.c.bf16 %v352, %v352
        %v360 = vpack.c.bf16 %v353, %v353
        %v361 = vpack.c.bf16 %v358, %v358
        %v365 = vunpack.c.l.b16 %v359
        %v366 = vunpack.c.l.b16 %v360
        %v367 = vunpack.c.l.b16 %v361
        %v368 = vpack.c.b16 %v366, %v365
        %v369 = vpack.c.b16 %v367, %v367
        %372 = vst [vmem:[#allocation2 + $0x30] sm:$0xff] %v368
        %373 = vst [vmem:[#allocation2 + $0x38] sm:$0xf] %v369
        %v374 = vld [vmem:[%s194] sm:$0xff]
        %v375 = vld [vmem:[%s194 + $0x8] sm:$0xf]
        %v376 = vunpack.c.l.bf16 %v374
        %v377 = vunpack.c.h.bf16 %v374
        %v378 = vunpack.c.l.bf16 %v375
        %382 = vrot.lane.b32.xlu0 %v376, 108
        %v383 = vpop.permute.xlu0 %382
        %384 = vrot.lane.b32.xlu0 %v377, 108
        %v385 = vpop.permute.xlu0 %384
        %386 = vrot.lane.b32.xlu0 %v378, 108
        %v387 = vpop.permute.xlu0 %386
        %vm388 = vcmask 883712
        %v389 = vsel %vm388, %v383, %v385
        %v390 = vsel %vm388, %v385, %v387
        %v395 = vsel %vm388, %v387, %v383
        %v396 = vpack.c.bf16 %v389, %v389
        %v397 = vpack.c.bf16 %v390, %v390
        %v398 = vpack.c.bf16 %v395, %v395
        %v402 = vunpack.c.l.b16 %v396
        %v403 = vunpack.c.l.b16 %v397
        %v404 = vunpack.c.l.b16 %v398
        %v405 = vpack.c.b16 %v403, %v402
        %v406 = vpack.c.b16 %v404, %v404
        %409 = vst [vmem:[#allocation2 + $0x3c] sm:$0xff] %v405
        %410 = vst [vmem:[#allocation2 + $0x44] sm:$0xf] %v406
        %v411 = vld [vmem:[%s194] sm:$0xff]
        %v412 = vld [vmem:[%s194 + $0x8] sm:$0xf]
        %v413 = vunpack.c.l.bf16 %v411
        %v414 = vunpack.c.h.bf16 %v411
        %v415 = vunpack.c.l.bf16 %v412
        %419 = vrot.lane.b32.xlu0 %v413, 92
        %v420 = vpop.permute.xlu0 %419
        %421 = vrot.lane.b32.xlu0 %v414, 92
        %v422 = vpop.permute.xlu0 %421
        %423 = vrot.lane.b32.xlu0 %v415, 92
        %v424 = vpop.permute.xlu0 %423
        %vm425 = vcmask 752640
        %v426 = vsel %vm425, %v420, %v422
        %v427 = vsel %vm425, %v422, %v424
        %v432 = vsel %vm425, %v424, %v420
        %v433 = vpack.c.bf16 %v426, %v426
        %v434 = vpack.c.bf16 %v427, %v427
        %v435 = vpack.c.bf16 %v432, %v432
        %v439 = vunpack.c.l.b16 %v433
        %v440 = vunpack.c.l.b16 %v434
        %v441 = vunpack.c.l.b16 %v435
        %v442 = vpack.c.b16 %v440, %v439
        %v443 = vpack.c.b16 %v441, %v441
        %446 = vst [vmem:[#allocation2 + $0x48] sm:$0xff] %v442
        %447 = vst [vmem:[#allocation2 + $0x50] sm:$0xf] %v443
        %v448 = vld [vmem:[%s194] sm:$0xff]
        %v449 = vld [vmem:[%s194 + $0x8] sm:$0xf]
        %v450 = vunpack.c.l.bf16 %v448
        %v451 = vunpack.c.h.bf16 %v448
        %v452 = vunpack.c.l.bf16 %v449
        %456 = vrot.lane.b32.xlu0 %v450, 91
        %v457 = vpop.permute.xlu0 %456
        %458 = vrot.lane.b32.xlu0 %v451, 91
        %v459 = vpop.permute.xlu0 %458
        %460 = vrot.lane.b32.xlu0 %v452, 91
        %v461 = vpop.permute.xlu0 %460
        %vm462 = vcmask 744448
        %v463 = vsel %vm462, %v457, %v459
        %v464 = vsel %vm462, %v459, %v461
        %v469 = vsel %vm462, %v461, %v457
        %v470 = vpack.c.bf16 %v463, %v463
        %v471 = vpack.c.bf16 %v464, %v464
        %v472 = vpack.c.bf16 %v469, %v469
        %v476 = vunpack.c.l.b16 %v470
        %v477 = vunpack.c.l.b16 %v471
        %v478 = vunpack.c.l.b16 %v472
        %v479 = vpack.c.b16 %v477, %v476
        %v480 = vpack.c.b16 %v478, %v478
        %483 = vst [vmem:[#allocation2 + $0x54] sm:$0xff] %v479
        %484 = vst [vmem:[#allocation2 + $0x5c] sm:$0xf] %v480
        %v485 = vld [vmem:[%s194] sm:$0xff]
        %v486 = vld [vmem:[%s194 + $0x8] sm:$0xf]
        %v487 = vunpack.c.l.bf16 %v485
        %v488 = vunpack.c.h.bf16 %v485
        %v489 = vunpack.c.l.bf16 %v486
        %493 = vrot.lane.b32.xlu0 %v487, 90
        %v494 = vpop.permute.xlu0 %493
        %495 = vrot.lane.b32.xlu0 %v488, 90
        %v496 = vpop.permute.xlu0 %495
        %497 = vrot.lane.b32.xlu0 %v489, 90
        %v498 = vpop.permute.xlu0 %497
        %vm499 = vcmask 736256
        %v500 = vsel %vm499, %v494, %v496
        %v501 = vsel %vm499, %v496, %v498
        %v506 = vsel %vm499, %v498, %v494
        %v507 = vpack.c.bf16 %v500, %v500
        %v508 = vpack.c.bf16 %v501, %v501
        %v509 = vpack.c.bf16 %v506, %v506
        %v513 = vunpack.c.l.b16 %v507
        %v514 = vunpack.c.l.b16 %v508
        %v515 = vunpack.c.l.b16 %v509
        %v516 = vpack.c.b16 %v514, %v513
        %v517 = vpack.c.b16 %v515, %v515
        %520 = vst [vmem:[#allocation2 + $0x60] sm:$0xff] %v516
        %521 = vst [vmem:[#allocation2 + $0x68] sm:$0xf] %v517
        %v522 = vld [vmem:[#allocation6] sm:$0xf]
        %v523 = vld [vmem:[#allocation2] sm:$0xff]
        %v524 = vld [vmem:[#allocation2 + $0x8] sm:$0xf]
        %v525 = vld [vmem:[#allocation2 + $0xc] sm:$0xff]
        %v526 = vld [vmem:[#allocation2 + $0x14] sm:$0xf]
        %v527 = vld [vmem:[#allocation2 + $0x18] sm:$0xff]
        %v528 = vld [vmem:[#allocation2 + $0x20] sm:$0xf]
        %v529 = vld [vmem:[#allocation2 + $0x24] sm:$0xff]
        %v530 = vld [vmem:[#allocation2 + $0x2c] sm:$0xf]
        %v531 = vld [vmem:[#allocation2 + $0x30] sm:$0xff]
        %v532 = vld [vmem:[#allocation2 + $0x38] sm:$0xf]
        %v533 = vld [vmem:[#allocation2 + $0x3c] sm:$0xff]
        %v534 = vld [vmem:[#allocation2 + $0x44] sm:$0xf]
        %v535 = vld [vmem:[#allocation2 + $0x48] sm:$0xff]
        %v536 = vld [vmem:[#allocation2 + $0x50] sm:$0xf]
        %v537 = vld [vmem:[#allocation2 + $0x54] sm:$0xff]
        %v538 = vld [vmem:[#allocation2 + $0x5c] sm:$0xf]
        %v539 = vld [vmem:[#allocation2 + $0x60] sm:$0xff]
        %v540 = vld [vmem:[#allocation2 + $0x68] sm:$0xf]
        %v559 = vunpack.c.l.b16 %v523
        %v560 = vunpack.c.h.b16 %v523
        %v561 = vunpack.c.l.b16 %v524
        %v562 = vunpack.c.l.b16 %v525
        %v563 = vunpack.c.h.b16 %v525
        %v564 = vunpack.c.l.b16 %v526
        %v565 = vunpack.c.l.b16 %v527
        %v566 = vunpack.c.h.b16 %v527
        %v567 = vunpack.c.l.b16 %v528
        %v568 = vunpack.c.l.b16 %v529
        %v569 = vunpack.c.h.b16 %v529
        %v570 = vunpack.c.l.b16 %v530
        %v571 = vunpack.c.l.b16 %v531
        %v572 = vunpack.c.h.b16 %v531
        %v573 = vunpack.c.l.b16 %v532
        %v574 = vunpack.c.l.b16 %v533
        %v575 = vunpack.c.h.b16 %v533
        %v576 = vunpack.c.l.b16 %v534
        %v577 = vunpack.c.l.b16 %v535
        %v578 = vunpack.c.h.b16 %v535
        %v579 = vunpack.c.l.b16 %v536
        %v580 = vunpack.c.l.b16 %v537
        %v581 = vunpack.c.h.b16 %v537
        %v582 = vunpack.c.l.b16 %v538
        %v583 = vunpack.c.l.b16 %v539
        %v584 = vunpack.c.h.b16 %v539
        %v585 = vunpack.c.l.b16 %v540
        %v586 = vpack.c.b16 %v562, %v559
        %v587 = vpack.c.b16 %v563, %v560
        %v588 = vpack.c.b16 %v564, %v561
        %v589 = vpack.c.b16 %v568, %v565
        %v590 = vpack.c.b16 %v569, %v566
        %v591 = vpack.c.b16 %v570, %v567
        %v592 = vpack.c.b16 %v574, %v571
        %v593 = vpack.c.b16 %v575, %v572
        %v594 = vpack.c.b16 %v576, %v573
        %v595 = vpack.c.b16 %v580, %v577
        %v596 = vpack.c.b16 %v581, %v578
        %v597 = vpack.c.b16 %v582, %v579
        %v598 = vpack.c.b16 %v583, %v583
        %v599 = vpack.c.b16 %v584, %v584
        %v600 = vpack.c.b16 %v585, %v585
        %vm613 = vcmask 588800
        %v615 = vsel %vm613, %v522, 0
        %vm617 = vcmask 1043456
        %v619 = vsel %vm617, %v598, 0
        %v622 = vsel %vm617, %v599, 0
        %v625 = vsel %vm617, %v600, 0
        %627 = vmatprep.subr.bf16.mxu0 %v587
        %628 = vmatpush1.bf16.msra.mxu0 %v586
        %629 = vmatprep.subr.bf16.mxu0 %v590
        %630 = vmatpush1.bf16.msra.mxu0 %v589
        %631 = vmatprep.subr.bf16.mxu0 %v593
        %632 = vmatpush1.bf16.msra.mxu0 %v592
        %633 = vmatprep.subr.bf16.mxu0 %v596
        %634 = vmatpush1.bf16.msra.mxu0 %v595
        %635 = vmatprep.subr.bf16.mxu0 %v622
        %636 = vmatpush1.bf16.msra.mxu0 %v619
        %637 = vmatprep.subr.bf16.mxu0 0
        %638 = vmatpush1.bf16.msra.mxu0 0
        %639 = vmatprep.subr.bf16.mxu0 0
        %640 = vmatpush1.bf16.msra.mxu0 0
        %641 = vmatprep.subr.bf16.mxu0 0
        %642 = vmatpush1.bf16.msra.mxu0 0
        %643 = vmatprep.subr.bf16.mxu0 0
        %644 = vmatpush1.bf16.msra.mxu0 0
        %645 = vmatprep.subr.bf16.mxu0 0
        %646 = vmatpush1.bf16.msra.mxu0 0
        %647 = vmatprep.subr.bf16.mxu0 0
        %648 = vmatpush1.bf16.msra.mxu0 0
        %649 = vmatprep.subr.bf16.mxu0 0
        %650 = vmatpush1.bf16.msra.mxu0 0
        %651 = vmatprep.subr.bf16.mxu0 0
        %652 = vmatpush1.bf16.msra.mxu0 0
        %653 = vmatprep.subr.bf16.mxu0 0
        %654 = vmatpush1.bf16.msra.mxu0 0
        %655 = vmatprep.subr.bf16.mxu0 0
        %656 = vmatpush1.bf16.msra.mxu0 0
        %657 = vmatprep.subr.bf16.mxu0 0
        %658 = vmatpush1.bf16.msra.mxu0 0
        %659 = vmatprep.mubr.bf16.mxu0 0
        %660 = vmatmul.mubr.bf16.gmra.mrb[0].mxu0 %v615
        %v661 = vpop.f32.mrb[0].mxu0
        %v662 = vadd.f32 0.0, %v661
        %v663 = vpop.f32.mrb[0].mxu0
        %v664 = vadd.f32 0.0, %v663
        %v665 = vpop.f32.mrb[0].mxu0
        %v666 = vpop.f32.mrb[0].mxu0
        %667 = vdwg.mxu0
        %668 = vmatprep.subr.bf16.mxu0 0
        %669 = vmatpush1.bf16.msra.mxu0 %v588
        %670 = vmatprep.subr.bf16.mxu0 0
        %671 = vmatpush1.bf16.msra.mxu0 %v591
        %672 = vmatprep.subr.bf16.mxu0 0
        %673 = vmatpush1.bf16.msra.mxu0 %v594
        %674 = vmatprep.subr.bf16.mxu0 0
        %675 = vmatpush1.bf16.msra.mxu0 %v597
        %676 = vmatprep.subr.bf16.mxu0 0
        %677 = vmatpush1.bf16.msra.mxu0 %v625
        %678 = vmatprep.subr.bf16.mxu0 0
        %679 = vmatpush1.bf16.msra.mxu0 0
        %680 = vmatprep.subr.bf16.mxu0 0
        %681 = vmatpush1.bf16.msra.mxu0 0
        %682 = vmatprep.subr.bf16.mxu0 0
        %683 = vmatpush1.bf16.msra.mxu0 0
        %684 = vmatprep.subr.bf16.mxu0 0
        %685 = vmatpush1.bf16.msra.mxu0 0
        %686 = vmatprep.subr.bf16.mxu0 0
        %687 = vmatpush1.bf16.msra.mxu0 0
        %688 = vmatprep.subr.bf16.mxu0 0
        %689 = vmatpush1.bf16.msra.mxu0 0
        %690 = vmatprep.subr.bf16.mxu0 0
        %691 = vmatpush1.bf16.msra.mxu0 0
        %692 = vmatprep.subr.bf16.mxu0 0
        %693 = vmatpush1.bf16.msra.mxu0 0
        %694 = vmatprep.subr.bf16.mxu0 0
        %695 = vmatpush1.bf16.msra.mxu0 0
        %696 = vmatprep.subr.bf16.mxu0 0
        %697 = vmatpush1.bf16.msra.mxu0 0
        %698 = vmatprep.subr.bf16.mxu0 0
        %699 = vmatpush1.bf16.msra.mxu0 0
        %700 = vmatprep.mubr.bf16.mxu0 0
        %701 = vmatmul.mubr.bf16.gmra.mrb[0].mxu0 %v615
        %v702 = vpop.f32.mrb[0].mxu0
        %v703 = vadd.f32 0.0, %v702
        %v704 = vpop.f32.mrb[0].mxu0
        %v705 = vpop.f32.mrb[0].mxu0
        %v706 = vpop.f32.mrb[0].mxu0
        %707 = vdwg.mxu0
        %v708 = vld [vmem:[%s2] sm:$0x7]
        %vm709 = vcmp.ne.f32.partialorder %v708, 0.0
        %v710 = vsel %vm709, 1, 0
        %v711 = vlaneseq
        %v712 = vshrl.u32 %v711, 7
        %v713 = vsub.s32 0, %v712
        %v714 = vrot.slane %v710, %v713
        %v715 = vlaneseq
        %v716 = vshrl.u32 %v715, 7
        %v717 = vsub.s32 1, %v716
        %v718 = vrot.slane %v710, %v717
        %v719 = vlaneseq
        %v720 = vshrl.u32 %v719, 7
        %v721 = vsub.s32 2, %v720
        %v722 = vrot.slane %v710, %v721
        %vm723 = vcmp.eq.s32.totalorder %v714, 1
        %vm724 = vcmp.eq.s32.totalorder %v718, 1
        %vm725 = vcmp.eq.s32.totalorder %v722, 1
        %v726 = vsel %vm723, %v662, 0.0
        %v727 = vsel %vm724, %v664, 0.0
        %v728 = vsel %vm725, %v703, 0.0
        %v729 = vadd.f32 %v726, %v727
        %v730 = vadd.f32 %v729, %v728
        %731 = vadd.xlane.f32.xlu0 %v730
        %v732 = vpop.xlane.xlu0 %731
        %v733 = vmul.f32 %v662, %v662
        %v734 = vmul.f32 %v664, %v664
        %v735 = vmul.f32 %v703, %v703
        %v736 = vsel %vm723, %v733, 0.0
        %v737 = vsel %vm724, %v734, 0.0
        %v738 = vsel %vm725, %v735, 0.0
        %v739 = vadd.f32 %v736, %v737
        %v740 = vadd.f32 %v739, %v738
        %741 = vadd.xlane.f32.xlu0 %v740
        %v742 = vpop.xlane.xlu0 %741
        %v743 = vmul.f32 %v732, 0.00390625
        %v744 = vmul.f32 %v742, 0.00390625
        %v745 = vmul.f32 %v743, %v743
        %v746 = vsub.f32 %v744, %v745
        %v747 = vmax.f32 %v746, 0.0
        %v748 = vadd.f32 %v747, 1e-05
        %v749 = vrsqrt.pop %v748
        %v750 = vsub.f32 %v662, %v743
        %v751 = vsub.f32 %v664, %v743
        %v752 = vsub.f32 %v703, %v743
        %v753 = vmul.f32 %v750, %v749
        %v754 = vmul.f32 %v751, %v749
        %v755 = vmul.f32 %v752, %v749
        %v756 = vmax.f32 %v753, 0.0
        %v757 = vmax.f32 %v754, 0.0
        %v758 = vmax.f32 %v755, 0.0
        %759 = vst [vmem:[%s220] sm:$0xff] %v756
        %760 = vst [vmem:[%s220 + $0x8] sm:$0xff] %v757
        %761 = vst [vmem:[%s220 + $0x10] sm:$0xff] %v758
        %s762 = sand.u32 %s116, 1
        %s763 = scalar_lea.sflag [#allocation5], %s762
        %s764 = sand.u32 %s116, 1
        %s765 = smul.addr %s764, 24
        %s766 = scalar_lea.vmem [#allocation8], %s765
        // Predicated region
        $region41: #{tpu_custom_call.1} parent=31 // pred_check
          %p767 = pneg %p126
        $region42: #{tpu_custom_call.1} parent=31 // pred_check_branch
          %769 = sbr.rel (%p767) target = $region44
        $region43: #{tpu_custom_call.1} parent=31 // pred_region
          %s771 = ssub.s32 384, 384
          %772 = vsyncadd %s763, %s771
          %s773 = smul.addr %s26, 3
          %s774 = smul.addr %s25, 3
          %s775 = sadd.s32 %s773, %s774
          %s776 = smul.addr %s775, 128
          %s777 = scalar_lea.hbm %s3, %s776
          %s779 = sshll.u32 %s766, 4
          %s780 = int_to_ptr.vmem [resolvable:$true] %s779
          %782 = dma.vmem_to_hbm [thread:$0]  %s780, 384, %s777, %s763
        $region44: #{tpu_custom_call.1} parent=31 // pred_fallthru
          _
      $region32: #{tpu_custom_call.1} parent=5 // pred_fallthru
        _
      %p783 = scmp.le.s32.totalorder 2, %s16
      // Predicated region
      $region45: #{tpu_custom_call.1} parent=5 // pred_check
        %p784 = pneg %p783
      $region46: #{tpu_custom_call.1} parent=5 // pred_check_branch
        %786 = sbr.rel (%p784) target = $region48
      $region47: #{tpu_custom_call.1} parent=5 // pred_region
        %s787 = ssub.s32 %s16, 2
        // Predicated region
        $region49: #{tpu_custom_call.1} parent=47 // pred_check
          %p788 = pneg %p132
        $region50: #{tpu_custom_call.1} parent=47 // pred_check_branch
          %790 = sbr.rel (%p788) target = $region52
        $region51: #{tpu_custom_call.1} parent=47 // pred_region
          %s791 = sand.u32 %s117, 1
          %s792 = scalar_lea.sflag [#allocation5], %s791
          %s793 = sand.u32 %s117, 1
          %s794 = smul.addr %s793, 24
          %s795 = scalar_lea.vmem [#allocation8], %s794
          %796 = dma.done %s792, 384
        $region52: #{tpu_custom_call.1} parent=47 // pred_fallthru
          _
      $region48: #{tpu_custom_call.1} parent=5 // pred_fallthru
        _
    $region6: #{tpu_custom_call.1} parent=1 // loop_footer
      %s20 = sadd.s32 1, %s16
    $region7: #{tpu_custom_call.1} parent=1 // loop_footer_branch
      %15 = sbr.rel target = $region3
    $region8: #{tpu_custom_call.1} parent=1 // loop_exit
      _
    %797 = vsyncpa [#allocation4], 1
    %s798 = scalar_lea.sflag [#allocation4], 1
    %799 = vsyncpa %s798, 1
    %800 = vsyncpa [#allocation7], 1
    %801 = vsyncpa [#allocation5], 1
    %s802 = scalar_lea.sflag [#allocation5], 1
    %803 = vsyncpa %s802, 1

</llo_original>
